<compile_context>
chip_gen: v7x
topology: tpu7x:2x2x1
jax: 0.10.0
libtpu: 0.0.40
codegen_flags: <defaults>
</compile_context>

<pallas_src>
import numpy as np
import jax
import jax.numpy as jnp
from jax.experimental import pallas as pl
from jax.experimental.pallas import tpu as pltpu


def _round_up(x, m):
    return ((x + m - 1) // m) * m


def _choose_tb(B, block_b):
    """Pick the batch tile size.

    Large tiles (default cap 2048 rows) amortize the ~0.35 us per-grid-step
    overhead; we also aim for >= 2 tiles whenever B > 8 so the "parallel"
    batch axis can be sharded across v7x's two TensorCores.  tb is a multiple
    of 8 (sublane alignment) unless it equals B exactly (full-extent block).
    """
    block_b = max(8, block_b)
    if B <= 8:
        return B  # single full-extent block; block dim == array dim is always legal
    return min(block_b, _round_up(pl.cdiv(B, 2), 8))


def _actor_kernel(obs_ref, act_ref,
                  w1_ref, b1_ref, w2_ref, b2_ref, w3_ref, b3_ref,
                  inv_std_ref, const_ref,
                  mu_ref, logp_ref):
    x = obs_ref[...]                                             # (TB, obs_dim)

    # mu_net: Linear -> Tanh -> Linear -> Tanh -> Linear (Identity)
    h1 = jnp.tanh(jnp.dot(x, w1_ref[...],
                          preferred_element_type=jnp.float32) + b1_ref[...])
    h2 = jnp.tanh(jnp.dot(h1, w2_ref[...],
                          preferred_element_type=jnp.float32) + b2_ref[...])
    mu = jnp.dot(h2, w3_ref[...],
                 preferred_element_type=jnp.float32) + b3_ref[...]   # (TB, act_dim)
    mu_ref[...] = mu

    # Diagonal Gaussian log-prob of `act` under N(mu, diag(exp(log_std)^2)).
    z = (act_ref[...] - mu) * inv_std_ref[...]                   # standardized
    quad = jnp.sum(z * z, axis=-1, keepdims=True)                # (TB, 1)
    logp_ref[...] = -0.5 * quad - const_ref[0, 0]                # (TB, 1)


def mlp_gaussian_actor_forward(obs, act, kp, *, block_b=2048):
    """Batched MLP + diagonal-Gaussian log-prob in one Pallas kernel.

    obs: (B, obs_dim) f32, act: (B, act_dim) f32.
    kp: kernel params from prepare_kernel_params().
    Returns (mu (B, act_dim), logp_a (B,)).
    """
    B, obs_dim = obs.shape
    act_dim = act.shape[1]

    tb = _choose_tb(B, block_b)
    grid = (pl.cdiv(B, tb),)          # ragged trailing block handled by Pallas

    const_idx = lambda i: (0, 0)      # parameters pinned: same block across all tiles

    mu, logp = pl.pallas_call(
        _actor_kernel,
        out_shape=(jax.ShapeDtypeStruct((B, act_dim), jnp.float32),
                   jax.ShapeDtypeStruct((B, 1), jnp.float32)),
        grid=grid,
        in_specs=[
            pl.BlockSpec((tb, obs_dim), lambda i: (i, 0)),        # obs: batch-tiled
            pl.BlockSpec((tb, act_dim), lambda i: (i, 0)),        # act: batch-tiled
            pl.BlockSpec(kp["w1"].shape, const_idx),
            pl.BlockSpec(kp["b1"].shape, const_idx),
            pl.BlockSpec(kp["w2"].shape, const_idx),
            pl.BlockSpec(kp["b2"].shape, const_idx),
            pl.BlockSpec(kp["w3"].shape, const_idx),
            pl.BlockSpec(kp["b3"].shape, const_idx),
            pl.BlockSpec(kp["inv_std"].shape, const_idx),
            pl.BlockSpec(memory_space=pltpu.MemorySpace.SMEM),    # (1,1) logp constant
        ],
        out_specs=(pl.BlockSpec((tb, act_dim), lambda i: (i, 0)),
                   pl.BlockSpec((tb, 1), lambda i: (i, 0))),
        compiler_params=pltpu.CompilerParams(
            dimension_semantics=("parallel",)),  # v7x: shard batch tiles over both TCs
    )(obs, act,
      kp["w1"], kp["b1"], kp["w2"], kp["b2"], kp["w3"], kp["b3"],
      kp["inv_std"], kp["logp_const"])

    return mu, logp.reshape(B)


def init_params(key, obs_dim, hidden_sizes, act_dim):
    """Deterministic parameter init (PyTorch-style uniform fan-in bounds)."""
    sizes = [obs_dim] + list(hidden_sizes) + [act_dim]
    params = {}
    for n, (fan_in, fan_out) in zip(["1", "2", "3"], zip(sizes[:-1], sizes[1:])):
        key, kw, kb = jax.random.split(key, 3)
        bound = 1.0 / np.sqrt(fan_in)
        params["w" + n] = jax.random.uniform(
            kw, (fan_in, fan_out), jnp.float32, -bound, bound)
        params["b" + n] = jax.random.uniform(
            kb, (1, fan_out), jnp.float32, -bound, bound)
    # nn.Parameter(torch.Tensor(act_dim).fill_(-0.5))
    params["log_std"] = jnp.full((1, act_dim), -0.5, dtype=jnp.float32)
    return params


def prepare_kernel_params(params):
    """One-time (parameter-only) preprocessing for the kernel.

    inv_std = exp(-log_std) and the Gaussian log-prob constant are hoisted out
    of the per-call path (EUP exp + lane reduce done once here, not per call).
    """
    act_dim = params["w3"].shape[1]
    inv_std = jnp.exp(-params["log_std"])                         # (1, act_dim)
    const = (jnp.sum(params["log_std"])
             + 0.5 * act_dim * jnp.log(2.0 * jnp.pi)).reshape(1, 1).astype(jnp.float32)
    return {"w1": params["w1"], "b1": params["b1"],
            "w2": params["w2"], "b2": params["b2"],
            "w3": params["w3"], "b3": params["b3"],
            "inv_std": inv_std, "logp_const": const}


def _reference(obs, act, params):
    h1 = jnp.tanh(obs @ params["w1"] + params["b1"])
    h2 = jnp.tanh(h1 @ params["w2"] + params["b2"])
    mu = h2 @ params["w3"] + params["b3"]
    log_std = params["log_std"][0]
    z = (act - mu) / jnp.exp(log_std)
    k = act.shape[-1]
    logp = (-0.5 * jnp.sum(z * z, axis=-1)
            - jnp.sum(log_std) - 0.5 * k * jnp.log(2.0 * jnp.pi))
    return mu, logp


if __name__ == "__main__":
    B, OBS_DIM, ACT_DIM = 40, 16, 4
    HIDDEN = [32, 32]

    key = jax.random.PRNGKey(0)
    key, k_obs, k_act, k_par = jax.random.split(key, 4)
    obs = jax.random.normal(k_obs, (B, OBS_DIM), jnp.float32)
    act = jax.random.normal(k_act, (B, ACT_DIM), jnp.float32)
    params = init_params(k_par, OBS_DIM, HIDDEN, ACT_DIM)
    kparams = prepare_kernel_params(params)

    # Default block_b (2048) with B=40 picks tb=24 -> 2 batch tiles (24 + ragged 16),
    # exercising the multi-tile grid, the ragged trailing block, and the v7x-friendly
    # >=2-tile split. Production rollout batches get 1024-2048-row tiles automatically.
    mu, logp_a = mlp_gaussian_actor_forward(obs, act, kparams)
    jax.block_until_ready((mu, logp_a))

    mu_ref, logp_ref = _reference(obs, act, params)
    np.testing.assert_allclose(np.asarray(mu), np.asarray(mu_ref),
                               rtol=1e-5, atol=1e-5)
    np.testing.assert_allclose(np.asarray(logp_a), np.asarray(logp_ref),
                               rtol=1e-5, atol=1e-5)
    print("KERNEL_OK")
</pallas_src>

<mosaic_0001>
module attributes {stable_mosaic.version = 11 : i64} {
  func.func @_actor_kernel(%arg0: i32, %arg1: memref<24x16xf32, #tpu.memory_space<vmem>>, %arg2: memref<24x4xf32, #tpu.memory_space<vmem>>, %arg3: memref<16x32xf32, #tpu.memory_space<vmem>>, %arg4: memref<1x32xf32, #tpu.memory_space<vmem>>, %arg5: memref<32x32xf32, #tpu.memory_space<vmem>>, %arg6: memref<1x32xf32, #tpu.memory_space<vmem>>, %arg7: memref<32x4xf32, #tpu.memory_space<vmem>>, %arg8: memref<1x4xf32, #tpu.memory_space<vmem>>, %arg9: memref<1x4xf32, #tpu.memory_space<vmem>>, %arg10: memref<1x1xf32, #tpu.memory_space<smem>>, %arg11: memref<24x4xf32, #tpu.memory_space<vmem>>, %arg12: memref<24x1xf32, #tpu.memory_space<vmem>>) attributes {dimension_semantics = [#tpu.dimension_semantics<parallel>], iteration_bounds = array<i64: 2>, scalar_prefetch = 0 : i64, scratch_operands = 0 : i64, tpu.core_type = #tpu.core_type<tc>, window_params = [{transform_indices = @transform_0, window_bounds = array<i64: 24, 16>}, {transform_indices = @transform_1, window_bounds = array<i64: 24, 4>}, {pipeline_mode = #tpu.pipeline_mode<synchronous>, transform_indices = @transform_2, window_bounds = array<i64: 16, 32>}, {pipeline_mode = #tpu.pipeline_mode<synchronous>, transform_indices = @transform_3, window_bounds = array<i64: 1, 32>}, {pipeline_mode = #tpu.pipeline_mode<synchronous>, transform_indices = @transform_4, window_bounds = array<i64: 32, 32>}, {pipeline_mode = #tpu.pipeline_mode<synchronous>, transform_indices = @transform_5, window_bounds = array<i64: 1, 32>}, {pipeline_mode = #tpu.pipeline_mode<synchronous>, transform_indices = @transform_6, window_bounds = array<i64: 32, 4>}, {pipeline_mode = #tpu.pipeline_mode<synchronous>, transform_indices = @transform_7, window_bounds = array<i64: 1, 4>}, {pipeline_mode = #tpu.pipeline_mode<synchronous>, transform_indices = @transform_8, window_bounds = array<i64: 1, 4>}, {transform_indices = @transform_9, window_bounds = array<i64: 1, 1>}, {transform_indices = @transform_10, window_bounds = array<i64: 24, 4>}, {transform_indices = @transform_11, window_bounds = array<i64: 24, 1>}]} {
    %c0 = arith.constant 0 : index
    %c0_0 = arith.constant 0 : index
    %0 = vector.load %arg1[%c0, %c0_0] : memref<24x16xf32, #tpu.memory_space<vmem>>, vector<24x16xf32>
    %c0_1 = arith.constant 0 : index
    %c0_2 = arith.constant 0 : index
    %1 = vector.load %arg3[%c0_1, %c0_2] : memref<16x32xf32, #tpu.memory_space<vmem>>, vector<16x32xf32>
    %cst = arith.constant dense<0.000000e+00> : vector<24x32xf32>
    %2 = tpu.matmul %0, %1, %cst {dimension_numbers = #tpu.dot_dimension_numbers<[1], [0], [0], [1], [0, 0, 1, 1], [], []>} : vector<24x16xf32>, vector<16x32xf32>, vector<24x32xf32> -> vector<24x32xf32>
    %c0_3 = arith.constant 0 : index
    %c0_4 = arith.constant 0 : index
    %3 = vector.load %arg4[%c0_3, %c0_4] : memref<1x32xf32, #tpu.memory_space<vmem>>, vector<1x32xf32>
    %4 = vector.broadcast %3 : vector<1x32xf32> to vector<24x32xf32>
    %5 = arith.addf %2, %4 : vector<24x32xf32>
    %6 = math.tanh %5 : vector<24x32xf32>
    %c0_5 = arith.constant 0 : index
    %c0_6 = arith.constant 0 : index
    %7 = vector.load %arg5[%c0_5, %c0_6] : memref<32x32xf32, #tpu.memory_space<vmem>>, vector<32x32xf32>
    %cst_7 = arith.constant dense<0.000000e+00> : vector<24x32xf32>
    %8 = tpu.matmul %6, %7, %cst_7 {dimension_numbers = #tpu.dot_dimension_numbers<[1], [0], [0], [1], [0, 0, 1, 1], [], []>} : vector<24x32xf32>, vector<32x32xf32>, vector<24x32xf32> -> vector<24x32xf32>
    %c0_8 = arith.constant 0 : index
    %c0_9 = arith.constant 0 : index
    %9 = vector.load %arg6[%c0_8, %c0_9] : memref<1x32xf32, #tpu.memory_space<vmem>>, vector<1x32xf32>
    %10 = vector.broadcast %9 : vector<1x32xf32> to vector<24x32xf32>
    %11 = arith.addf %8, %10 : vector<24x32xf32>
    %12 = math.tanh %11 : vector<24x32xf32>
    %c0_10 = arith.constant 0 : index
    %c0_11 = arith.constant 0 : index
    %13 = vector.load %arg7[%c0_10, %c0_11] : memref<32x4xf32, #tpu.memory_space<vmem>>, vector<32x4xf32>
    %cst_12 = arith.constant dense<0.000000e+00> : vector<24x4xf32>
    %14 = tpu.matmul %12, %13, %cst_12 {dimension_numbers = #tpu.dot_dimension_numbers<[1], [0], [0], [1], [0, 0, 1, 1], [], []>} : vector<24x32xf32>, vector<32x4xf32>, vector<24x4xf32> -> vector<24x4xf32>
    %c0_13 = arith.constant 0 : index
    %c0_14 = arith.constant 0 : index
    %15 = vector.load %arg8[%c0_13, %c0_14] : memref<1x4xf32, #tpu.memory_space<vmem>>, vector<1x4xf32>
    %16 = vector.broadcast %15 : vector<1x4xf32> to vector<24x4xf32>
    %17 = arith.addf %14, %16 : vector<24x4xf32>
    %c0_15 = arith.constant 0 : index
    %c0_16 = arith.constant 0 : index
    %18 = vector.load %arg11[%c0_15, %c0_16] : memref<24x4xf32, #tpu.memory_space<vmem>>, vector<24x4xf32>
    tpu.vector_store %arg11[%c0_15, %c0_16], %17 {strides = array<i32>} : memref<24x4xf32, #tpu.memory_space<vmem>>, vector<24x4xf32>,
    %c0_17 = arith.constant 0 : index
    %c0_18 = arith.constant 0 : index
    %19 = vector.load %arg2[%c0_17, %c0_18] : memref<24x4xf32, #tpu.memory_space<vmem>>, vector<24x4xf32>
    %20 = arith.subf %19, %17 : vector<24x4xf32>
    %c0_19 = arith.constant 0 : index
    %c0_20 = arith.constant 0 : index
    %21 = vector.load %arg9[%c0_19, %c0_20] : memref<1x4xf32, #tpu.memory_space<vmem>>, vector<1x4xf32>
    %22 = vector.broadcast %21 : vector<1x4xf32> to vector<24x4xf32>
    %23 = arith.mulf %20, %22 : vector<24x4xf32>
    %24 = arith.mulf %23, %23 : vector<24x4xf32>
    %cst_21 = arith.constant dense<0.000000e+00> : vector<24xf32>
    %25 = vector.multi_reduction <add>, %24, %cst_21 [1] : vector<24x4xf32> to vector<24xf32>
    %26 = vector.shape_cast %25 : vector<24xf32> to vector<24x1xf32>
    %cst_22 = arith.constant -5.000000e-01 : f32
    %27 = vector.broadcast %cst_22 : f32 to vector<24x1xf32>
    %28 = arith.mulf %27, %26 : vector<24x1xf32>
    %c0_23 = arith.constant 0 : index
    %c0_24 = arith.constant 0 : index
    %29 = memref.load %arg10[%c0_23, %c0_24] : memref<1x1xf32, #tpu.memory_space<smem>>
    %30 = vector.broadcast %29 : f32 to vector<24x1xf32>
    %31 = arith.subf %28, %30 : vector<24x1xf32>
    %c0_25 = arith.constant 0 : index
    %c0_26 = arith.constant 0 : index
    %32 = vector.load %arg12[%c0_25, %c0_26] : memref<24x1xf32, #tpu.memory_space<vmem>>, vector<24x1xf32>
    tpu.vector_store %arg12[%c0_25, %c0_26], %31 {strides = array<i32>} : memref<24x1xf32, #tpu.memory_space<vmem>>, vector<24x1xf32>,
    return
  }
  func.func @transform_0(%arg0: i32) -> (i32, i32) {
    %c0_i32 = arith.constant 0 : i32
    %c0_i32_0 = arith.constant 0 : i32
    return %arg0, %c0_i32 : i32, i32
  }
  func.func @transform_1(%arg0: i32) -> (i32, i32) {
    %c0_i32 = arith.constant 0 : i32
    %c0_i32_0 = arith.constant 0 : i32
    return %arg0, %c0_i32 : i32, i32
  }
  func.func @transform_2(%arg0: i32) -> (i32, i32) {
    %c0_i32 = arith.constant 0 : i32
    %c0_i32_0 = arith.constant 0 : i32
    %c0_i32_1 = arith.constant 0 : i32
    return %c0_i32, %c0_i32_0 : i32, i32
  }
  func.func @transform_3(%arg0: i32) -> (i32, i32) {
    %c0_i32 = arith.constant 0 : i32
    %c0_i32_0 = arith.constant 0 : i32
    %c0_i32_1 = arith.constant 0 : i32
    return %c0_i32, %c0_i32_0 : i32, i32
  }
  func.func @transform_4(%arg0: i32) -> (i32, i32) {
    %c0_i32 = arith.constant 0 : i32
    %c0_i32_0 = arith.constant 0 : i32
    %c0_i32_1 = arith.constant 0 : i32
    return %c0_i32, %c0_i32_0 : i32, i32
  }
  func.func @transform_5(%arg0: i32) -> (i32, i32) {
    %c0_i32 = arith.constant 0 : i32
    %c0_i32_0 = arith.constant 0 : i32
    %c0_i32_1 = arith.constant 0 : i32
    return %c0_i32, %c0_i32_0 : i32, i32
  }
  func.func @transform_6(%arg0: i32) -> (i32, i32) {
    %c0_i32 = arith.constant 0 : i32
    %c0_i32_0 = arith.constant 0 : i32
    %c0_i32_1 = arith.constant 0 : i32
    return %c0_i32, %c0_i32_0 : i32, i32
  }
  func.func @transform_7(%arg0: i32) -> (i32, i32) {
    %c0_i32 = arith.constant 0 : i32
    %c0_i32_0 = arith.constant 0 : i32
    %c0_i32_1 = arith.constant 0 : i32
    return %c0_i32, %c0_i32_0 : i32, i32
  }
  func.func @transform_8(%arg0: i32) -> (i32, i32) {
    %c0_i32 = arith.constant 0 : i32
    %c0_i32_0 = arith.constant 0 : i32
    %c0_i32_1 = arith.constant 0 : i32
    return %c0_i32, %c0_i32_0 : i32, i32
  }
  func.func @transform_9(%arg0: i32) -> (i32, i32) {
    %c0_i32 = arith.constant 0 : i32
    %c0_i32_0 = arith.constant 0 : i32
    %c0_i32_1 = arith.constant 0 : i32
    return %c0_i32, %c0_i32_0 : i32, i32
  }
  func.func @transform_10(%arg0: i32) -> (i32, i32) {
    %c0_i32 = arith.constant 0 : i32
    %c0_i32_0 = arith.constant 0 : i32
    return %arg0, %c0_i32 : i32, i32
  }
  func.func @transform_11(%arg0: i32) -> (i32, i32) {
    %c0_i32 = arith.constant 0 : i32
    %c0_i32_0 = arith.constant 0 : i32
    return %arg0, %c0_i32 : i32, i32
  }
}

</mosaic_0001>

<llo_original>
// kernel: tpu_custom_call.1
$region0: #{tpu_custom_call.1}
  #allocation0 [shape = 'u32[]', space=smem, size = 0x4, offset = 0x4, fixed_abs, tag = 'smem constant byte address 0x4 - core index']
  #allocation1 [shape = 'u32[144,128]{1,0:T(1,128)}', space=vmem, size = 0x12000, scoped, tag = 'internal scratch']
  #allocation2 [shape = 'f32[1,1]{1,0:T(1,128)S(6)}', space=smem, size = 0x200, scoped, tag = 'scoped memory for tpu_custom_call.1']
  %s0 = inlined_call_operand.vmem [shape: f32[40,16], index: 0, kind: input, shape index: {}]
  %s1 = inlined_call_operand.vmem [shape: f32[40,4], index: 1, kind: input, shape index: {}]
  %s2 = inlined_call_operand.vmem [shape: f32[16,32], index: 2, kind: input, shape index: {}]
  %s3 = inlined_call_operand.vmem [shape: f32[1,32], index: 3, kind: input, shape index: {}]
  %s4 = inlined_call_operand.vmem [shape: f32[32,32], index: 4, kind: input, shape index: {}]
  %s5 = inlined_call_operand.vmem [shape: f32[1,32], index: 5, kind: input, shape index: {}]
  %s6 = inlined_call_operand.vmem [shape: f32[32,4], index: 6, kind: input, shape index: {}]
  %s7 = inlined_call_operand.vmem [shape: f32[1,4], index: 7, kind: input, shape index: {}]
  %s8 = inlined_call_operand.vmem [shape: f32[1,4], index: 8, kind: input, shape index: {}]
  %s9 = inlined_call_operand.<no memory space> [shape: f32[1,1], index: 9, kind: input, shape index: {}]
  %s10 = inlined_call_operand.vmem [shape: f32[40,4], index: 10, kind: output, shape index: {0}]
  %s11 = inlined_call_operand.vmem [shape: f32[40,1], index: 11, kind: output, shape index: {1}]
  %12 = xla_tuple %s10, %s11
  %s13 = sld [smem:[#allocation0]]
  $region177: #{tpu_custom_call.1} parent=0
    _
  %s15 = ssub.s32 1, %s13
  %s16 = scalar_select 0, %s15, %s13
  %17 = sst [smem:[#allocation2]] %s9
  $region1: #{tpu_custom_call.1} parent=0
    #allocation3 [shape = 'u8[24576]{0}', space=vmem, size = 0x6000, scoped, tag = 'output window, operand 0']
    #allocation4 [shape = 'u8[24576]{0}', space=vmem, size = 0x6000, scoped, tag = 'output window, operand 1']
    loop: start=0, step=1, limit=4
    $region2: #{tpu_custom_call.1} parent=1 // loop_pre_header
      _
    $region3: #{tpu_custom_call.1} parent=1 // loop_header
      %s19 = sphi 0, %s23
      %p20 = scmp.ge.s32.totalorder %s19, 4
      %s29 = sphi 0, %s31
      %s32 = sphi 0, %s29
      %s33 = sphi 0, %s32
      %s49 = sphi 0, %s33
      %s55 = sphi 0, %s57
      %s58 = sphi 0, %s55
      %s59 = sphi 0, %s58
      %s75 = sphi 0, %s59
      %s79 = sphi 0, %s79
      %s81 = sphi 0, %s79
      %s82 = sphi 0, %s81
      %s96 = sphi 0, %s82
      %s100 = sphi 0, %s100
      %s102 = sphi 0, %s100
      %s103 = sphi 0, %s102
      %s117 = sphi 0, %s103
      %s121 = sphi 0, %s121
      %s123 = sphi 0, %s121
      %s124 = sphi 0, %s123
      %s138 = sphi 0, %s124
      %s142 = sphi 0, %s142
      %s144 = sphi 0, %s142
      %s145 = sphi 0, %s144
      %s159 = sphi 0, %s145
      %s163 = sphi 0, %s163
      %s165 = sphi 0, %s163
      %s166 = sphi 0, %s165
      %s180 = sphi 0, %s166
      %s184 = sphi 0, %s184
      %s186 = sphi 0, %s184
      %s187 = sphi 0, %s186
      %s201 = sphi 0, %s187
      %s205 = sphi 0, %s205
      %s207 = sphi 0, %s205
      %s208 = sphi 0, %s207
      %s222 = sphi 0, %s208
      %s226 = sphi 0, %s226
      %s228 = sphi 0, %s226
      %s229 = sphi 0, %s228
      %s243 = sphi 0, %s229
      %s249 = sphi 0, %s251
      %s252 = sphi 0, %s249
      %s253 = sphi 0, %s252
      %s269 = sphi 0, %s253
      %s275 = sphi 0, %s277
      %s278 = sphi 0, %s275
      %s279 = sphi 0, %s278
      %s295 = sphi 0, %s279
    $region4: #{tpu_custom_call.1} parent=1 // loop_header_branch
      %22 = sbr.rel (%p20) target = $region8
    $region5: #{tpu_custom_call.1} parent=1 // loop_body
      %s24 = ssub.s32 %s19, 1
      %s25 = ssub.s32 %s19, 2
      %s26 = sadd.s32 %s19, 1
      %s27 = ssub.s32 %s19, %s26
      %p28 = scmp.eq.s32.totalorder %s27, 0
      %s30 = sadd.s32 %s29, 1
      %s31 = scalar_select %p28, %s29, %s30
      %p34 = pneg %p28
      %p35 = scmp.eq.s32.totalorder %s19, 1
      %p36 = por %p34, %p35
      %p37 = scmp.ne.s32.totalorder %s29, %s32
      %p38 = scmp.eq.s32.totalorder %s19, 0
      %p39 = por %p37, %p38
      %p40 = scmp.ne.s32.totalorder %s29, %s32
      %p41 = scmp.eq.s32.totalorder %s24, 1
      %p42 = por %p40, %p41
      %p43 = scmp.ne.s32.totalorder %s32, %s33
      %p44 = scmp.eq.s32.totalorder %s24, 0
      %p45 = por %p43, %p44
      %p46 = scmp.ne.s32.totalorder %s32, %s33
      %p47 = scmp.eq.s32.totalorder %s25, 1
      %p48 = por %p46, %p47
      %p50 = scmp.ne.s32.totalorder %s33, %s49
      %p51 = scmp.eq.s32.totalorder %s25, 0
      %p52 = por %p50, %p51
      %s53 = ssub.s32 %s19, %s26
      %p54 = scmp.eq.s32.totalorder %s53, 0
      %s56 = sadd.s32 %s55, 1
      %s57 = scalar_select %p54, %s55, %s56
      %p60 = pneg %p54
      %p61 = scmp.eq.s32.totalorder %s19, 1
      %p62 = por %p60, %p61
      %p63 = scmp.ne.s32.totalorder %s55, %s58
      %p64 = scmp.eq.s32.totalorder %s19, 0
      %p65 = por %p63, %p64
      %p66 = scmp.ne.s32.totalorder %s55, %s58
      %p67 = scmp.eq.s32.totalorder %s24, 1
      %p68 = por %p66, %p67
      %p69 = scmp.ne.s32.totalorder %s58, %s59
      %p70 = scmp.eq.s32.totalorder %s24, 0
      %p71 = por %p69, %p70
      %p72 = scmp.ne.s32.totalorder %s58, %s59
      %p73 = scmp.eq.s32.totalorder %s25, 1
      %p74 = por %p72, %p73
      %p76 = scmp.ne.s32.totalorder %s59, %s75
      %p77 = scmp.eq.s32.totalorder %s25, 0
      %p78 = por %p76, %p77
      %s80 = sadd.s32 %s79, 1
      %p83 = scmp.eq.s32.totalorder %s19, 1
      %p84 = scmp.ne.s32.totalorder %s79, %s81
      %p85 = scmp.eq.s32.totalorder %s19, 0
      %p86 = por %p84, %p85
      %p87 = scmp.ne.s32.totalorder %s79, %s81
      %p88 = scmp.eq.s32.totalorder %s24, 1
      %p89 = por %p87, %p88
      %p90 = scmp.ne.s32.totalorder %s81, %s82
      %p91 = scmp.eq.s32.totalorder %s24, 0
      %p92 = por %p90, %p91
      %p93 = scmp.ne.s32.totalorder %s81, %s82
      %p94 = scmp.eq.s32.totalorder %s25, 1
      %p95 = por %p93, %p94
      %p97 = scmp.ne.s32.totalorder %s82, %s96
      %p98 = scmp.eq.s32.totalorder %s25, 0
      %p99 = por %p97, %p98
      %s101 = sadd.s32 %s100, 1
      %p104 = scmp.eq.s32.totalorder %s19, 1
      %p105 = scmp.ne.s32.totalorder %s100, %s102
      %p106 = scmp.eq.s32.totalorder %s19, 0
      %p107 = por %p105, %p106
      %p108 = scmp.ne.s32.totalorder %s100, %s102
      %p109 = scmp.eq.s32.totalorder %s24, 1
      %p110 = por %p108, %p109
      %p111 = scmp.ne.s32.totalorder %s102, %s103
      %p112 = scmp.eq.s32.totalorder %s24, 0
      %p113 = por %p111, %p112
      %p114 = scmp.ne.s32.totalorder %s102, %s103
      %p115 = scmp.eq.s32.totalorder %s25, 1
      %p116 = por %p114, %p115
      %p118 = scmp.ne.s32.totalorder %s103, %s117
      %p119 = scmp.eq.s32.totalorder %s25, 0
      %p120 = por %p118, %p119
      %s122 = sadd.s32 %s121, 1
      %p125 = scmp.eq.s32.totalorder %s19, 1
      %p126 = scmp.ne.s32.totalorder %s121, %s123
      %p127 = scmp.eq.s32.totalorder %s19, 0
      %p128 = por %p126, %p127
      %p129 = scmp.ne.s32.totalorder %s121, %s123
      %p130 = scmp.eq.s32.totalorder %s24, 1
      %p131 = por %p129, %p130
      %p132 = scmp.ne.s32.totalorder %s123, %s124
      %p133 = scmp.eq.s32.totalorder %s24, 0
      %p134 = por %p132, %p133
      %p135 = scmp.ne.s32.totalorder %s123, %s124
      %p136 = scmp.eq.s32.totalorder %s25, 1
      %p137 = por %p135, %p136
      %p139 = scmp.ne.s32.totalorder %s124, %s138
      %p140 = scmp.eq.s32.totalorder %s25, 0
      %p141 = por %p139, %p140
      %s143 = sadd.s32 %s142, 1
      %p146 = scmp.eq.s32.totalorder %s19, 1
      %p147 = scmp.ne.s32.totalorder %s142, %s144
      %p148 = scmp.eq.s32.totalorder %s19, 0
      %p149 = por %p147, %p148
      %p150 = scmp.ne.s32.totalorder %s142, %s144
      %p151 = scmp.eq.s32.totalorder %s24, 1
      %p152 = por %p150, %p151
      %p153 = scmp.ne.s32.totalorder %s144, %s145
      %p154 = scmp.eq.s32.totalorder %s24, 0
      %p155 = por %p153, %p154
      %p156 = scmp.ne.s32.totalorder %s144, %s145
      %p157 = scmp.eq.s32.totalorder %s25, 1
      %p158 = por %p156, %p157
      %p160 = scmp.ne.s32.totalorder %s145, %s159
      %p161 = scmp.eq.s32.totalorder %s25, 0
      %p162 = por %p160, %p161
      %s164 = sadd.s32 %s163, 1
      %p167 = scmp.eq.s32.totalorder %s19, 1
      %p168 = scmp.ne.s32.totalorder %s163, %s165
      %p169 = scmp.eq.s32.totalorder %s19, 0
      %p170 = por %p168, %p169
      %p171 = scmp.ne.s32.totalorder %s163, %s165
      %p172 = scmp.eq.s32.totalorder %s24, 1
      %p173 = por %p171, %p172
      %p174 = scmp.ne.s32.totalorder %s165, %s166
      %p175 = scmp.eq.s32.totalorder %s24, 0
      %p176 = por %p174, %p175
      %p177 = scmp.ne.s32.totalorder %s165, %s166
      %p178 = scmp.eq.s32.totalorder %s25, 1
      %p179 = por %p177, %p178
      %p181 = scmp.ne.s32.totalorder %s166, %s180
      %p182 = scmp.eq.s32.totalorder %s25, 0
      %p183 = por %p181, %p182
      %s185 = sadd.s32 %s184, 1
      %p188 = scmp.eq.s32.totalorder %s19, 1
      %p189 = scmp.ne.s32.totalorder %s184, %s186
      %p190 = scmp.eq.s32.totalorder %s19, 0
      %p191 = por %p189, %p190
      %p192 = scmp.ne.s32.totalorder %s184, %s186
      %p193 = scmp.eq.s32.totalorder %s24, 1
      %p194 = por %p192, %p193
      %p195 = scmp.ne.s32.totalorder %s186, %s187
      %p196 = scmp.eq.s32.totalorder %s24, 0
      %p197 = por %p195, %p196
      %p198 = scmp.ne.s32.totalorder %s186, %s187
      %p199 = scmp.eq.s32.totalorder %s25, 1
      %p200 = por %p198, %p199
      %p202 = scmp.ne.s32.totalorder %s187, %s201
      %p203 = scmp.eq.s32.totalorder %s25, 0
      %p204 = por %p202, %p203
      %s206 = sadd.s32 %s205, 1
      %p209 = scmp.eq.s32.totalorder %s19, 1
      %p210 = scmp.ne.s32.totalorder %s205, %s207
      %p211 = scmp.eq.s32.totalorder %s19, 0
      %p212 = por %p210, %p211
      %p213 = scmp.ne.s32.totalorder %s205, %s207
      %p214 = scmp.eq.s32.totalorder %s24, 1
      %p215 = por %p213, %p214
      %p216 = scmp.ne.s32.totalorder %s207, %s208
      %p217 = scmp.eq.s32.totalorder %s24, 0
      %p218 = por %p216, %p217
      %p219 = scmp.ne.s32.totalorder %s207, %s208
      %p220 = scmp.eq.s32.totalorder %s25, 1
      %p221 = por %p219, %p220
      %p223 = scmp.ne.s32.totalorder %s208, %s222
      %p224 = scmp.eq.s32.totalorder %s25, 0
      %p225 = por %p223, %p224
      %s227 = sadd.s32 %s226, 1
      %p230 = scmp.eq.s32.totalorder %s19, 1
      %p231 = scmp.ne.s32.totalorder %s226, %s228
      %p232 = scmp.eq.s32.totalorder %s19, 0
      %p233 = por %p231, %p232
      %p234 = scmp.ne.s32.totalorder %s226, %s228
      %p235 = scmp.eq.s32.totalorder %s24, 1
      %p236 = por %p234, %p235
      %p237 = scmp.ne.s32.totalorder %s228, %s229
      %p238 = scmp.eq.s32.totalorder %s24, 0
      %p239 = por %p237, %p238
      %p240 = scmp.ne.s32.totalorder %s228, %s229
      %p241 = scmp.eq.s32.totalorder %s25, 1
      %p242 = por %p240, %p241
      %p244 = scmp.ne.s32.totalorder %s229, %s243
      %p245 = scmp.eq.s32.totalorder %s25, 0
      %p246 = por %p244, %p245
      %s247 = ssub.s32 %s19, %s26
      %p248 = scmp.eq.s32.totalorder %s247, 0
      %s250 = sadd.s32 %s249, 1
      %s251 = scalar_select %p248, %s249, %s250
      %p254 = pneg %p248
      %p255 = scmp.eq.s32.totalorder %s19, 1
      %p256 = por %p254, %p255
      %p257 = scmp.ne.s32.totalorder %s249, %s252
      %p258 = scmp.eq.s32.totalorder %s19, 0
      %p259 = por %p257, %p258
      %p260 = scmp.ne.s32.totalorder %s249, %s252
      %p261 = scmp.eq.s32.totalorder %s24, 1
      %p262 = por %p260, %p261
      %p263 = scmp.ne.s32.totalorder %s252, %s253
      %p264 = scmp.eq.s32.totalorder %s24, 0
      %p265 = por %p263, %p264
      %p266 = scmp.ne.s32.totalorder %s252, %s253
      %p267 = scmp.eq.s32.totalorder %s25, 1
      %p268 = por %p266, %p267
      %p270 = scmp.ne.s32.totalorder %s253, %s269
      %p271 = scmp.eq.s32.totalorder %s25, 0
      %p272 = por %p270, %p271
      %s273 = ssub.s32 %s19, %s26
      %p274 = scmp.eq.s32.totalorder %s273, 0
      %s276 = sadd.s32 %s275, 1
      %s277 = scalar_select %p274, %s275, %s276
      %p280 = pneg %p274
      %p281 = scmp.eq.s32.totalorder %s19, 1
      %p282 = por %p280, %p281
      %p283 = scmp.ne.s32.totalorder %s275, %s278
      %p284 = scmp.eq.s32.totalorder %s19, 0
      %p285 = por %p283, %p284
      %p286 = scmp.ne.s32.totalorder %s275, %s278
      %p287 = scmp.eq.s32.totalorder %s24, 1
      %p288 = por %p286, %p287
      %p289 = scmp.ne.s32.totalorder %s278, %s279
      %p290 = scmp.eq.s32.totalorder %s24, 0
      %p291 = por %p289, %p290
      %p292 = scmp.ne.s32.totalorder %s278, %s279
      %p293 = scmp.eq.s32.totalorder %s25, 1
      %p294 = por %p292, %p293
      %p296 = scmp.ne.s32.totalorder %s279, %s295
      %p297 = scmp.eq.s32.totalorder %s25, 0
      %p298 = por %p296, %p297
      %p299 = scmp.le.s32.totalorder 1, %s19
      %p300 = scmp.lt.s32.totalorder %s19, 3
      %p301 = pnand %p299, %p300
      %p302 = pneg %p301
      // Predicated region
      $region9: #{tpu_custom_call.1} parent=5 // pred_check
        _
      $region10: #{tpu_custom_call.1} parent=5 // pred_check_branch
        %304 = sbr.rel (%p301) target = $region12
      $region11: #{tpu_custom_call.1} parent=5 // pred_region
        %s305 = ssub.s32 %s19, 1
        // Predicated region
        $region13: #{tpu_custom_call.1} parent=11 // pred_check
          %p306 = pneg %p92
        $region14: #{tpu_custom_call.1} parent=11 // pred_check_branch
          %308 = sbr.rel (%p306) target = $region16
        $region15: #{tpu_custom_call.1} parent=11 // pred_region
          _
        $region16: #{tpu_custom_call.1} parent=11 // pred_fallthru
          _
        // Predicated region
        $region17: #{tpu_custom_call.1} parent=11 // pred_check
          %p309 = pneg %p113
        $region18: #{tpu_custom_call.1} parent=11 // pred_check_branch
          %311 = sbr.rel (%p309) target = $region20
        $region19: #{tpu_custom_call.1} parent=11 // pred_region
          _
        $region20: #{tpu_custom_call.1} parent=11 // pred_fallthru
          _
        // Predicated region
        $region21: #{tpu_custom_call.1} parent=11 // pred_check
          %p312 = pneg %p134
        $region22: #{tpu_custom_call.1} parent=11 // pred_check_branch
          %314 = sbr.rel (%p312) target = $region24
        $region23: #{tpu_custom_call.1} parent=11 // pred_region
          _
        $region24: #{tpu_custom_call.1} parent=11 // pred_fallthru
          _
        // Predicated region
        $region25: #{tpu_custom_call.1} parent=11 // pred_check
          %p315 = pneg %p155
        $region26: #{tpu_custom_call.1} parent=11 // pred_check_branch
          %317 = sbr.rel (%p315) target = $region28
        $region27: #{tpu_custom_call.1} parent=11 // pred_region
          _
        $region28: #{tpu_custom_call.1} parent=11 // pred_fallthru
          _
        // Predicated region
        $region29: #{tpu_custom_call.1} parent=11 // pred_check
          %p318 = pneg %p176
        $region30: #{tpu_custom_call.1} parent=11 // pred_check_branch
          %320 = sbr.rel (%p318) target = $region32
        $region31: #{tpu_custom_call.1} parent=11 // pred_region
          _
        $region32: #{tpu_custom_call.1} parent=11 // pred_fallthru
          _
        // Predicated region
        $region33: #{tpu_custom_call.1} parent=11 // pred_check
          %p321 = pneg %p197
        $region34: #{tpu_custom_call.1} parent=11 // pred_check_branch
          %323 = sbr.rel (%p321) target = $region36
        $region35: #{tpu_custom_call.1} parent=11 // pred_region
          _
        $region36: #{tpu_custom_call.1} parent=11 // pred_fallthru
          _
        // Predicated region
        $region37: #{tpu_custom_call.1} parent=11 // pred_check
          %p324 = pneg %p218
        $region38: #{tpu_custom_call.1} parent=11 // pred_check_branch
          %326 = sbr.rel (%p324) target = $region40
        $region39: #{tpu_custom_call.1} parent=11 // pred_region
          _
        $region40: #{tpu_custom_call.1} parent=11 // pred_fallthru
          _
        // Predicated region
        $region41: #{tpu_custom_call.1} parent=11 // pred_check
          %p327 = pneg %p239
        $region42: #{tpu_custom_call.1} parent=11 // pred_check_branch
          %329 = sbr.rel (%p327) target = $region44
        $region43: #{tpu_custom_call.1} parent=11 // pred_region
          _
        $region44: #{tpu_custom_call.1} parent=11 // pred_fallthru
          _
      $region12: #{tpu_custom_call.1} parent=5 // pred_fallthru
        _
      %p330 = scmp.lt.s32.totalorder %s19, 2
      // Predicated region
      $region45: #{tpu_custom_call.1} parent=5 // pred_check
        %p331 = pneg %p330
      $region46: #{tpu_custom_call.1} parent=5 // pred_check_branch
        %333 = sbr.rel (%p331) target = $region48
      $region47: #{tpu_custom_call.1} parent=5 // pred_region
        // Predicated region
        $region49: #{tpu_custom_call.1} parent=47 // pred_check
          %p334 = pneg %p39
        $region50: #{tpu_custom_call.1} parent=47 // pred_check_branch
          %336 = sbr.rel (%p334) target = $region52
        $region51: #{tpu_custom_call.1} parent=47 // pred_region
          %s337 = smul.u32 3, %s19
          %s338 = ssub.s32 5, %s337
          %p339 = scmp.lt.s32.totalorder %s338, 3
          %s340 = scalar_select %p339, %s338, 3
          %s341 = smul.u32 128, %s340
          %p342 = scmp.lt.s32.totalorder %s337, 4
          %s343 = scalar_select %p342, %s337, 4
          %s344 = smul.addr %s343, 8
          %s345 = scalar_lea.vmem %s0, %s344
          %s346 = smul.u32 3, %s19
          %s347 = ssub.s32 5, %s346
          %p348 = scmp.lt.s32.totalorder %s347, 3
          %s349 = scalar_select %p348, %s347, 3
          %s350 = smul.u32 128, %s349
        $region52: #{tpu_custom_call.1} parent=47 // pred_fallthru
          _
        // Predicated region
        $region53: #{tpu_custom_call.1} parent=47 // pred_check
          %p351 = pneg %p65
        $region54: #{tpu_custom_call.1} parent=47 // pred_check_branch
          %353 = sbr.rel (%p351) target = $region56
        $region55: #{tpu_custom_call.1} parent=47 // pred_region
          %s354 = smul.u32 3, %s19
          %s355 = ssub.s32 5, %s354
          %p356 = scmp.lt.s32.totalorder %s355, 3
          %s357 = scalar_select %p356, %s355, 3
          %s358 = smul.u32 128, %s357
          %p359 = scmp.lt.s32.totalorder %s354, 4
          %s360 = scalar_select %p359, %s354, 4
          %s361 = smul.addr %s360, 8
          %s362 = scalar_lea.vmem %s1, %s361
          %s363 = smul.u32 3, %s19
          %s364 = ssub.s32 5, %s363
          %p365 = scmp.lt.s32.totalorder %s364, 3
          %s366 = scalar_select %p365, %s364, 3
          %s367 = smul.u32 128, %s366
        $region56: #{tpu_custom_call.1} parent=47 // pred_fallthru
          _
      $region48: #{tpu_custom_call.1} parent=5 // pred_fallthru
        _
      %p368 = scmp.le.s32.totalorder 1, %s19
      %p369 = scmp.lt.s32.totalorder %s19, 3
      %p370 = pnand %p368, %p369
      %p371 = pneg %p370
      // Predicated region
      $region57: #{tpu_custom_call.1} parent=5 // pred_check
        _
      $region58: #{tpu_custom_call.1} parent=5 // pred_check_branch
        %373 = sbr.rel (%p370) target = $region60
      $region59: #{tpu_custom_call.1} parent=5 // pred_region
        %s374 = ssub.s32 %s19, 1
        %s375 = smul.u32 3, %s24
        %s376 = ssub.s32 5, %s375
        %p377 = scmp.lt.s32.totalorder %s376, 3
        %s378 = scalar_select %p377, %s376, 3
        %s379 = smul.u32 128, %s378
        %p380 = scmp.lt.s32.totalorder %s375, 4
        %s381 = scalar_select %p380, %s375, 4
        %s382 = smul.addr %s381, 8
        %s383 = scalar_lea.vmem %s0, %s382
        %p384 = pneg %p45
        %p385 = pneg %p42
        %s386 = smul.u32 3, %s24
        %s387 = ssub.s32 5, %s386
        %p388 = scmp.lt.s32.totalorder %s387, 3
        %s389 = scalar_select %p388, %s387, 3
        %s390 = smul.u32 128, %s389
        %p391 = scmp.lt.s32.totalorder %s386, 4
        %s392 = scalar_select %p391, %s386, 4
        %s393 = smul.addr %s392, 8
        %s394 = scalar_lea.vmem %s1, %s393
        %p395 = pneg %p71
        %p396 = pneg %p68
        %p397 = pneg %p92
        %p398 = pneg %p89
        %p399 = pneg %p113
        %p400 = pneg %p110
        %p401 = pneg %p134
        %p402 = pneg %p131
        %p403 = pneg %p155
        %p404 = pneg %p152
        %p405 = pneg %p176
        %p406 = pneg %p173
        %p407 = pneg %p197
        %p408 = pneg %p194
        %p409 = pneg %p218
        %p410 = pneg %p215
        %p411 = pneg %p239
        %p412 = pneg %p236
        %p413 = pneg %p265
        %p414 = pneg %p262
        %s415 = sand.u32 %s252, 1
        %s416 = sand.u32 %s252, 1
        %s417 = smul.addr %s416, 24
        %s418 = scalar_lea.vmem [#allocation3], %s417
        %p419 = pneg %p291
        %p420 = pneg %p288
        %s421 = sand.u32 %s278, 1
        %s422 = sand.u32 %s278, 1
        %s423 = smul.addr %s422, 24
        %s424 = scalar_lea.vmem [#allocation4], %s423
        %s425 = smul.u32 3, %s24
        %s426 = ssub.s32 5, %s425
        %p427 = scmp.lt.s32.totalorder %s426, 3
        %s428 = scalar_select %p427, %s426, 3
        %s429 = smul.u32 128, %s428
        %p430 = scmp.lt.s32.totalorder %s425, 4
        %s431 = scalar_select %p430, %s425, 4
        %s432 = smul.addr %s431, 8
        %s433 = scalar_lea.vmem %s0, %s432
        %s434 = smul.u32 3, %s24
        %s435 = ssub.s32 5, %s434
        %p436 = scmp.lt.s32.totalorder %s435, 3
        %s437 = scalar_select %p436, %s435, 3
        %s438 = smul.u32 128, %s437
        %s439 = smul.u32 3, %s24
        %s440 = ssub.s32 5, %s439
        %p441 = scmp.lt.s32.totalorder %s440, 3
        %s442 = scalar_select %p441, %s440, 3
        %s443 = smul.u32 128, %s442
        %p444 = scmp.lt.s32.totalorder %s439, 4
        %s445 = scalar_select %p444, %s439, 4
        %s446 = smul.addr %s445, 8
        %s447 = scalar_lea.vmem %s1, %s446
        %s448 = smul.u32 3, %s24
        %s449 = ssub.s32 5, %s448
        %p450 = scmp.lt.s32.totalorder %s449, 3
        %s451 = scalar_select %p450, %s449, 3
        %s452 = smul.u32 128, %s451
        %s453 = smul.u32 3, %s24
        %s454 = ssub.s32 5, %s453
        %p455 = scmp.lt.s32.totalorder %s454, 3
        %s456 = scalar_select %p455, %s454, 3
        %s457 = smul.u32 128, %s456
        %s458 = smul.u32 3, %s24
        %s459 = ssub.s32 5, %s458
        %p460 = scmp.lt.s32.totalorder %s459, 3
        %s461 = scalar_select %p460, %s459, 3
        %s462 = smul.u32 128, %s461
        %v463 = vld [vmem:[%s433] sm:$0xff]
        %v464 = vld [vmem:[%s433 + $0x8] sm:$0xff]
        %v465 = vld [vmem:[%s433 + $0x10] sm:$0xff]
        %v466 = vld [vmem:[%s2] sm:$0xff]
        %v467 = vld [vmem:[%s2 + $0x8] sm:$0xff]
        %v468 = vld [vmem:[%s3] sm:$0x1]
        %v470 = vlaneseq
        %v471 = vshrl.u32 %v470, 7
        %v472 = vsub.s32 0, %v471
        %v473 = vrot.slane %v468, %v472
        %vm475 = vcmask 130048
        %v477 = vsel %vm475, %v463, 0
        %v480 = vsel %vm475, %v464, 0
        %v483 = vsel %vm475, %v465, 0
        %485 = vmatprep.subr.mxu0 0.0
        %486 = vmatpush1.msra.mxu0 %v466
        %487 = vmatprep.subr.mxu0 0.0
        %488 = vmatpush1.msra.mxu0 %v467
        %489 = vmatprep.subr.mxu0 0.0
        %490 = vmatpush1.msra.mxu0 0.0
        %491 = vmatprep.subr.mxu0 0.0
        %492 = vmatpush1.msra.mxu0 0.0
        %493 = vmatprep.subr.mxu0 0.0
        %494 = vmatpush1.msra.mxu0 0.0
        %495 = vmatprep.subr.mxu0 0.0
        %496 = vmatpush1.msra.mxu0 0.0
        %497 = vmatprep.subr.mxu0 0.0
        %498 = vmatpush1.msra.mxu0 0.0
        %499 = vmatprep.subr.mxu0 0.0
        %500 = vmatpush1.msra.mxu0 0.0
        %501 = vmatprep.subr.mxu0 0.0
        %502 = vmatpush1.msra.mxu0 0.0
        %503 = vmatprep.subr.mxu0 0.0
        %504 = vmatpush1.msra.mxu0 0.0
        %505 = vmatprep.subr.mxu0 0.0
        %506 = vmatpush1.msra.mxu0 0.0
        %507 = vmatprep.subr.mxu0 0.0
        %508 = vmatpush1.msra.mxu0 0.0
        %509 = vmatprep.subr.mxu0 0.0
        %510 = vmatpush1.msra.mxu0 0.0
        %511 = vmatprep.subr.mxu0 0.0
        %512 = vmatpush1.msra.mxu0 0.0
        %513 = vmatprep.subr.mxu0 0.0
        %514 = vmatpush1.msra.mxu0 0.0
        %515 = vmatprep.subr.mxu0 0.0
        %516 = vmatpush1.msra.mxu0 0.0
        %517 = vmatprep.subr.mxu0 0.0
        %518 = vmatpush1.msra.mxu0 0.0
        %519 = vmatprep.subr.mxu0 0.0
        %520 = vmatpush1.msra.mxu0 0.0
        %521 = vmatprep.subr.mxu0 0.0
        %522 = vmatpush1.msra.mxu0 0.0
        %523 = vmatprep.subr.mxu0 0.0
        %524 = vmatpush1.msra.mxu0 0.0
        %525 = vmatprep.subr.mxu0 0.0
        %526 = vmatpush1.msra.mxu0 0.0
        %527 = vmatprep.subr.mxu0 0.0
        %528 = vmatpush1.msra.mxu0 0.0
        %529 = vmatprep.subr.mxu0 0.0
        %530 = vmatpush1.msra.mxu0 0.0
        %531 = vmatprep.subr.mxu0 0.0
        %532 = vmatpush1.msra.mxu0 0.0
        %533 = vmatprep.subr.mxu0 0.0
        %534 = vmatpush1.msra.mxu0 0.0
        %535 = vmatprep.subr.mxu0 0.0
        %536 = vmatpush1.msra.mxu0 0.0
        %537 = vmatprep.subr.mxu0 0.0
        %538 = vmatpush1.msra.mxu0 0.0
        %539 = vmatprep.subr.mxu0 0.0
        %540 = vmatpush1.msra.mxu0 0.0
        %541 = vmatprep.subr.mxu0 0.0
        %542 = vmatpush1.msra.mxu0 0.0
        %543 = vmatprep.subr.mxu0 0.0
        %544 = vmatpush1.msra.mxu0 0.0
        %545 = vmatprep.subr.mxu0 0.0
        %546 = vmatpush1.msra.mxu0 0.0
        %547 = vmatprep.subr.mxu0 0.0
        %548 = vmatpush1.msra.mxu0 0.0
        %549 = vmatprep.mubr.f32.mxu0 0.0
        %550 = vmatmul.mubr.f32.gmra.mrb[0].mxu0 %v477
        %v551 = vpop.f32.mrb[0].mxu0
        %v552 = vadd.f32 %v473, %v551
        %v553 = vpop.f32.mrb[0].mxu0
        %554 = vmatprep.mubr.f32.mxu0 0.0
        %555 = vmatmul.mubr.f32.gmra.mrb[0].mxu0 %v480
        %v556 = vpop.f32.mrb[0].mxu0
        %v557 = vadd.f32 %v473, %v556
        %v558 = vpop.f32.mrb[0].mxu0
        %559 = vmatprep.mubr.f32.mxu0 0.0
        %560 = vmatmul.mubr.f32.gmra.mrb[0].mxu0 %v483
        %v561 = vpop.f32.mrb[0].mxu0
        %v562 = vadd.f32 %v473, %v561
        %v563 = vpop.f32.mrb[0].mxu0
        %564 = vdwg.mxu0
        %v565 = vtanh.pop %v552
        %v566 = vtanh.pop %v557
        %v567 = vtanh.pop %v562
        %v568 = vld [vmem:[%s4] sm:$0xff]
        %v569 = vld [vmem:[%s4 + $0x8] sm:$0xff]
        %v570 = vld [vmem:[%s4 + $0x10] sm:$0xff]
        %v571 = vld [vmem:[%s4 + $0x18] sm:$0xff]
        %v572 = vld [vmem:[%s5] sm:$0x1]
        %v574 = vlaneseq
        %v575 = vshrl.u32 %v574, 7
        %v576 = vsub.s32 0, %v575
        %v577 = vrot.slane %v572, %v576
        %vm579 = vcmask 261120
        %v581 = vsel %vm579, %v565, 0
        %v584 = vsel %vm579, %v566, 0
        %v587 = vsel %vm579, %v567, 0
        %589 = vmatprep.subr.mxu0 0.0
        %590 = vmatpush1.msra.mxu0 %v568
        %591 = vmatprep.subr.mxu0 0.0
        %592 = vmatpush1.msra.mxu0 %v569
        %593 = vmatprep.subr.mxu0 0.0
        %594 = vmatpush1.msra.mxu0 %v570
        %595 = vmatprep.subr.mxu0 0.0
        %596 = vmatpush1.msra.mxu0 %v571
        %597 = vmatprep.subr.mxu0 0.0
        %598 = vmatpush1.msra.mxu0 0.0
        %599 = vmatprep.subr.mxu0 0.0
        %600 = vmatpush1.msra.mxu0 0.0
        %601 = vmatprep.subr.mxu0 0.0
        %602 = vmatpush1.msra.mxu0 0.0
        %603 = vmatprep.subr.mxu0 0.0
        %604 = vmatpush1.msra.mxu0 0.0
        %605 = vmatprep.subr.mxu0 0.0
        %606 = vmatpush1.msra.mxu0 0.0
        %607 = vmatprep.subr.mxu0 0.0
        %608 = vmatpush1.msra.mxu0 0.0
        %609 = vmatprep.subr.mxu0 0.0
        %610 = vmatpush1.msra.mxu0 0.0
        %611 = vmatprep.subr.mxu0 0.0
        %612 = vmatpush1.msra.mxu0 0.0
        %613 = vmatprep.subr.mxu0 0.0
        %614 = vmatpush1.msra.mxu0 0.0
        %615 = vmatprep.subr.mxu0 0.0
        %616 = vmatpush1.msra.mxu0 0.0
        %617 = vmatprep.subr.mxu0 0.0
        %618 = vmatpush1.msra.mxu0 0.0
        %619 = vmatprep.subr.mxu0 0.0
        %620 = vmatpush1.msra.mxu0 0.0
        %621 = vmatprep.subr.mxu0 0.0
        %622 = vmatpush1.msra.mxu0 0.0
        %623 = vmatprep.subr.mxu0 0.0
        %624 = vmatpush1.msra.mxu0 0.0
        %625 = vmatprep.subr.mxu0 0.0
        %626 = vmatpush1.msra.mxu0 0.0
        %627 = vmatprep.subr.mxu0 0.0
        %628 = vmatpush1.msra.mxu0 0.0
        %629 = vmatprep.subr.mxu0 0.0
        %630 = vmatpush1.msra.mxu0 0.0
        %631 = vmatprep.subr.mxu0 0.0
        %632 = vmatpush1.msra.mxu0 0.0
        %633 = vmatprep.subr.mxu0 0.0
        %634 = vmatpush1.msra.mxu0 0.0
        %635 = vmatprep.subr.mxu0 0.0
        %636 = vmatpush1.msra.mxu0 0.0
        %637 = vmatprep.subr.mxu0 0.0
        %638 = vmatpush1.msra.mxu0 0.0
        %639 = vmatprep.subr.mxu0 0.0
        %640 = vmatpush1.msra.mxu0 0.0
        %641 = vmatprep.subr.mxu0 0.0
        %642 = vmatpush1.msra.mxu0 0.0
        %643 = vmatprep.subr.mxu0 0.0
        %644 = vmatpush1.msra.mxu0 0.0
        %645 = vmatprep.subr.mxu0 0.0
        %646 = vmatpush1.msra.mxu0 0.0
        %647 = vmatprep.subr.mxu0 0.0
        %648 = vmatpush1.msra.mxu0 0.0
        %649 = vmatprep.subr.mxu0 0.0
        %650 = vmatpush1.msra.mxu0 0.0
        %651 = vmatprep.subr.mxu0 0.0
        %652 = vmatpush1.msra.mxu0 0.0
        %653 = vmatprep.mubr.f32.mxu0 0.0
        %654 = vmatmul.mubr.f32.gmra.mrb[0].mxu0 %v581
        %v655 = vpop.f32.mrb[0].mxu0
        %v656 = vadd.f32 %v577, %v655
        %v657 = vpop.f32.mrb[0].mxu0
        %658 = vmatprep.mubr.f32.mxu0 0.0
        %659 = vmatmul.mubr.f32.gmra.mrb[0].mxu0 %v584
        %v660 = vpop.f32.mrb[0].mxu0
        %v661 = vadd.f32 %v577, %v660
        %v662 = vpop.f32.mrb[0].mxu0
        %663 = vmatprep.mubr.f32.mxu0 0.0
        %664 = vmatmul.mubr.f32.gmra.mrb[0].mxu0 %v587
        %v665 = vpop.f32.mrb[0].mxu0
        %v666 = vadd.f32 %v577, %v665
        %v667 = vpop.f32.mrb[0].mxu0
        %668 = vdwg.mxu0
        %v669 = vtanh.pop %v656
        %v670 = vtanh.pop %v661
        %v671 = vtanh.pop %v666
        %v672 = vld [vmem:[%s6] sm:$0xff]
        %v673 = vld [vmem:[%s6 + $0x8] sm:$0xff]
        %v674 = vld [vmem:[%s6 + $0x10] sm:$0xff]
        %v675 = vld [vmem:[%s6 + $0x18] sm:$0xff]
        %v676 = vld [vmem:[%s7] sm:$0x1]
        %v678 = vlaneseq
        %v679 = vshrl.u32 %v678, 7
        %v680 = vsub.s32 0, %v679
        %v681 = vrot.slane %v676, %v680
        %v684 = vsel %vm579, %v669, 0
        %v687 = vsel %vm579, %v670, 0
        %v690 = vsel %vm579, %v671, 0
        %692 = vmatprep.subr.mxu0 0.0
        %693 = vmatpush1.msra.mxu0 %v672
        %694 = vmatprep.subr.mxu0 0.0
        %695 = vmatpush1.msra.mxu0 %v673
        %696 = vmatprep.subr.mxu0 0.0
        %697 = vmatpush1.msra.mxu0 %v674
        %698 = vmatprep.subr.mxu0 0.0
        %699 = vmatpush1.msra.mxu0 %v675
        %700 = vmatprep.subr.mxu0 0.0
        %701 = vmatpush1.msra.mxu0 0.0
        %702 = vmatprep.subr.mxu0 0.0
        %703 = vmatpush1.msra.mxu0 0.0
        %704 = vmatprep.subr.mxu0 0.0
        %705 = vmatpush1.msra.mxu0 0.0
        %706 = vmatprep.subr.mxu0 0.0
        %707 = vmatpush1.msra.mxu0 0.0
        %708 = vmatprep.subr.mxu0 0.0
        %709 = vmatpush1.msra.mxu0 0.0
        %710 = vmatprep.subr.mxu0 0.0
        %711 = vmatpush1.msra.mxu0 0.0
        %712 = vmatprep.subr.mxu0 0.0
        %713 = vmatpush1.msra.mxu0 0.0
        %714 = vmatprep.subr.mxu0 0.0
        %715 = vmatpush1.msra.mxu0 0.0
        %716 = vmatprep.subr.mxu0 0.0
        %717 = vmatpush1.msra.mxu0 0.0
        %718 = vmatprep.subr.mxu0 0.0
        %719 = vmatpush1.msra.mxu0 0.0
        %720 = vmatprep.subr.mxu0 0.0
        %721 = vmatpush1.msra.mxu0 0.0
        %722 = vmatprep.subr.mxu0 0.0
        %723 = vmatpush1.msra.mxu0 0.0
        %724 = vmatprep.subr.mxu0 0.0
        %725 = vmatpush1.msra.mxu0 0.0
        %726 = vmatprep.subr.mxu0 0.0
        %727 = vmatpush1.msra.mxu0 0.0
        %728 = vmatprep.subr.mxu0 0.0
        %729 = vmatpush1.msra.mxu0 0.0
        %730 = vmatprep.subr.mxu0 0.0
        %731 = vmatpush1.msra.mxu0 0.0
        %732 = vmatprep.subr.mxu0 0.0
        %733 = vmatpush1.msra.mxu0 0.0
        %734 = vmatprep.subr.mxu0 0.0
        %735 = vmatpush1.msra.mxu0 0.0
        %736 = vmatprep.subr.mxu0 0.0
        %737 = vmatpush1.msra.mxu0 0.0
        %738 = vmatprep.subr.mxu0 0.0
        %739 = vmatpush1.msra.mxu0 0.0
        %740 = vmatprep.subr.mxu0 0.0
        %741 = vmatpush1.msra.mxu0 0.0
        %742 = vmatprep.subr.mxu0 0.0
        %743 = vmatpush1.msra.mxu0 0.0
        %744 = vmatprep.subr.mxu0 0.0
        %745 = vmatpush1.msra.mxu0 0.0
        %746 = vmatprep.subr.mxu0 0.0
        %747 = vmatpush1.msra.mxu0 0.0
        %748 = vmatprep.subr.mxu0 0.0
        %749 = vmatpush1.msra.mxu0 0.0
        %750 = vmatprep.subr.mxu0 0.0
        %751 = vmatpush1.msra.mxu0 0.0
        %752 = vmatprep.subr.mxu0 0.0
        %753 = vmatpush1.msra.mxu0 0.0
        %754 = vmatprep.subr.mxu0 0.0
        %755 = vmatpush1.msra.mxu0 0.0
        %756 = vmatprep.mubr.f32.mxu0 0.0
        %757 = vmatmul.mubr.f32.gmra.mrb[0].mxu0 %v684
        %v758 = vpop.f32.mrb[0].mxu0
        %v759 = vadd.f32 %v681, %v758
        %v760 = vpop.f32.mrb[0].mxu0
        %761 = vmatprep.mubr.f32.mxu0 0.0
        %762 = vmatmul.mubr.f32.gmra.mrb[0].mxu0 %v687
        %v763 = vpop.f32.mrb[0].mxu0
        %v764 = vadd.f32 %v681, %v763
        %v765 = vpop.f32.mrb[0].mxu0
        %766 = vmatprep.mubr.f32.mxu0 0.0
        %767 = vmatmul.mubr.f32.gmra.mrb[0].mxu0 %v690
        %v768 = vpop.f32.mrb[0].mxu0
        %v769 = vadd.f32 %v681, %v768
        %v770 = vpop.f32.mrb[0].mxu0
        %771 = vdwg.mxu0
        %vm772 = vcmask 31744
        %773 = vst.msk [vmem:[%s418] sm:$0xff] %vm772, %v759
        %774 = vst.msk [vmem:[%s418 + $0x8] sm:$0xff] %vm772, %v764
        %775 = vst.msk [vmem:[%s418 + $0x10] sm:$0xff] %vm772, %v769
        %v776 = vld [vmem:[%s447] sm:$0xff]
        %v777 = vld [vmem:[%s447 + $0x8] sm:$0xff]
        %v778 = vld [vmem:[%s447 + $0x10] sm:$0xff]
        %v779 = vsub.f32 %v776, %v759
        %v780 = vsub.f32 %v777, %v764
        %v781 = vsub.f32 %v778, %v769
        %v782 = vld [vmem:[%s8] sm:$0x1]
        %v784 = vlaneseq
        %v785 = vshrl.u32 %v784, 7
        %v786 = vsub.s32 0, %v785
        %v787 = vrot.slane %v782, %v786
        %v789 = vmul.f32 %v779, %v787
        %v790 = vmul.f32 %v780, %v787
        %v791 = vmul.f32 %v781, %v787
        %v792 = vmul.f32 %v789, %v789
        %v793 = vmul.f32 %v790, %v790
        %v794 = vmul.f32 %v791, %v791
        %v795 = vsel %vm772, %v792, 0.0
        %796 = vadd.xlane.f32.xlu0 %v795
        %v797 = vpop.xlane.xlu0 %796
        %v798 = vsel %vm772, %v793, 0.0
        %799 = vadd.xlane.f32.xlu0 %v798
        %v800 = vpop.xlane.xlu0 %799
        %v801 = vsel %vm772, %v794, 0.0
        %802 = vadd.xlane.f32.xlu0 %v801
        %v803 = vpop.xlane.xlu0 %802
        %v804 = vmul.f32 %v797, -0.5
        %v805 = vmul.f32 %v800, -0.5
        %v806 = vmul.f32 %v803, -0.5
        %s807 = sld [smem:[#allocation2]]
        %v808 = vstv %s807
        %v809 = vsub.f32 %v804, %v808
        %v810 = vsub.f32 %v805, %v808
        %v811 = vsub.f32 %v806, %v808
        %vm812 = vcmask 7168
        %813 = vst.msk [vmem:[%s424] sm:$0xff] %vm812, %v809
        %814 = vst.msk [vmem:[%s424 + $0x8] sm:$0xff] %vm812, %v810
        %815 = vst.msk [vmem:[%s424 + $0x10] sm:$0xff] %vm812, %v811
        %s816 = sand.u32 %s252, 1
        %s817 = sand.u32 %s252, 1
        %s818 = smul.addr %s817, 24
        %s819 = scalar_lea.vmem [#allocation3], %s818
        %s820 = sand.u32 %s278, 1
        %s821 = sand.u32 %s278, 1
        %s822 = smul.addr %s821, 24
        %s823 = scalar_lea.vmem [#allocation4], %s822
        // Predicated region
        $region61: #{tpu_custom_call.1} parent=59 // pred_check
          %p824 = pneg %p262
        $region62: #{tpu_custom_call.1} parent=59 // pred_check_branch
          %826 = sbr.rel (%p824) target = $region64
        $region63: #{tpu_custom_call.1} parent=59 // pred_region
          %s827 = smul.u32 3, %s24
          %s828 = ssub.s32 5, %s827
          %p829 = scmp.lt.s32.totalorder %s828, 3
          %s830 = scalar_select %p829, %s828, 3
          %s831 = smul.u32 128, %s830
          %p832 = scmp.ne.s32.totalorder 0, %s831
          %s833 = smul.addr %s827, 8
          %s834 = scalar_lea.vmem %s10, %s833
          // Predicated region
          $region65: #{tpu_custom_call.1} parent=63 // pred_check
            %p835 = pneg %p832
          $region66: #{tpu_custom_call.1} parent=63 // pred_check_branch
            %837 = sbr.rel (%p835) target = $region68
          $region67: #{tpu_custom_call.1} parent=63 // pred_region
            // Predicated region
            $region69: #{tpu_custom_call.1} parent=67 // pred_check
              _
            $region70: #{tpu_custom_call.1} parent=67 // pred_check_branch
              %839 = sbr.rel (0) target = $region72
            $region71: #{tpu_custom_call.1} parent=67 // pred_region
              // Predicated region
              $region91: #{tpu_custom_call.1} parent=71 // pred_check
                _
              $region92: #{tpu_custom_call.1} parent=71 // pred_check_branch
                %893 = sbr.rel (0) target = $region94
              $region93: #{tpu_custom_call.1} parent=71 // pred_region
                %s894 = sdiv.u32.pop %s830, 3
                %s895 = srem.u32.pop %s830, 3
                // While loop
                $region95: #{tpu_custom_call.1} parent=93 // loop_pre_header
                  _
                $region96: #{tpu_custom_call.1} parent=93 // loop_header
                  %s897 = sphi 0, %s899
                  %p898 = scmp.ge.s32.totalorder %s897, %s894
                  %s902 = sphi 0, %s913
                  %s903 = sphi %s819, %s916
                  %s904 = sphi %s834, %s917
                $region97: #{tpu_custom_call.1} parent=93 // loop_header_branch
                  %901 = sbr.rel (%p898) target = $region101
                $region98: #{tpu_custom_call.1} parent=93 // loop_body
                  %v905 = vld [vmem:[%s903] sm:$0xff]
                  %906 = vst [vmem:[%s904] sm:$0xff] %v905
                  %v907 = vld [vmem:[%s903 + $0x8] sm:$0xff]
                  %908 = vst [vmem:[%s904 + $0x8] sm:$0xff] %v907
                  %v909 = vld [vmem:[%s903 + $0x10] sm:$0xff]
                  %910 = vst [vmem:[%s904 + $0x10] sm:$0xff] %v909
                  %s911 = sadd.s32 1, %s902
                  %p912 = scmp.ge.s32.totalorder %s911, %s894
                  %s913 = scalar_select %p912, 0, %s911
                  %s914 = smul.u32 %s913, 24
                  %s915 = smul.u32 %s913, 24
                  %s916 = scalar_lea.vmem %s819, %s914 [#allocation3]
                  %s917 = scalar_lea.vmem %s834, %s915
                $region99: #{tpu_custom_call.1} parent=93 // loop_footer
                  %s899 = sadd.s32 %s897, 1
                $region100: #{tpu_custom_call.1} parent=93 // loop_footer_branch
                  %896 = sbr.rel target = $region96
                $region101: #{tpu_custom_call.1} parent=93 // loop_exit
                  _
                %s918 = sdiv.u32.pop %s830, 3
                %s919 = srem.u32.pop %s830, 3
                %s920 = smul.u32 %s918, 3
                %s921 = smul.u32 8, %s920
                %s922 = scalar_lea.vmem %s819, %s921 [#allocation3]
                %s923 = smul.u32 8, %s920
                %s924 = scalar_lea.vmem %s834, %s923
                // While loop
                $region102: #{tpu_custom_call.1} parent=93 // loop_pre_header
                  _
                $region103: #{tpu_custom_call.1} parent=93 // loop_header
                  %s926 = sphi 0, %s928
                  %p927 = scmp.ge.s32.totalorder %s926, %s919
                  %s931 = sphi 0, %s938
                  %s932 = sphi %s922, %s941
                  %s933 = sphi %s924, %s942
                $region104: #{tpu_custom_call.1} parent=93 // loop_header_branch
                  %930 = sbr.rel (%p927) target = $region108
                $region105: #{tpu_custom_call.1} parent=93 // loop_body
                  %v934 = vld [vmem:[%s932] sm:$0xff]
                  %935 = vst [vmem:[%s933] sm:$0xff] %v934
                  %s936 = sadd.s32 1, %s931
                  %p937 = scmp.ge.s32.totalorder %s936, %s919
                  %s938 = scalar_select %p937, 0, %s936
                  %s939 = smul.u32 %s938, 8
                  %s940 = smul.u32 %s938, 8
                  %s941 = scalar_lea.vmem %s922, %s939 [#allocation3]
                  %s942 = scalar_lea.vmem %s924, %s940
                $region106: #{tpu_custom_call.1} parent=93 // loop_footer
                  %s928 = sadd.s32 %s926, 1
                $region107: #{tpu_custom_call.1} parent=93 // loop_footer_branch
                  %925 = sbr.rel target = $region103
                $region108: #{tpu_custom_call.1} parent=93 // loop_exit
                  _
              $region94: #{tpu_custom_call.1} parent=71 // pred_fallthru
                _
              // Predicated region
              $region109: #{tpu_custom_call.1} parent=71 // pred_check
                _
              $region110: #{tpu_custom_call.1} parent=71 // pred_check_branch
                %944 = sbr.rel target = $region112
              $region111: #{tpu_custom_call.1} parent=71 // pred_region
                _
              $region112: #{tpu_custom_call.1} parent=71 // pred_fallthru
                _
            $region72: #{tpu_custom_call.1} parent=67 // pred_fallthru
              _
            // Predicated region
            $region73: #{tpu_custom_call.1} parent=67 // pred_check
              _
            $region74: #{tpu_custom_call.1} parent=67 // pred_check_branch
              %841 = sbr.rel target = $region76
            $region75: #{tpu_custom_call.1} parent=67 // pred_region
              %s843 = sdiv.u32.pop %s830, 3
              %s844 = srem.u32.pop %s830, 3
              // While loop
              $region77: #{tpu_custom_call.1} parent=75 // loop_pre_header
                _
              $region78: #{tpu_custom_call.1} parent=75 // loop_header
                %s846 = sphi 0, %s848
                %p847 = scmp.ge.s32.totalorder %s846, %s843
                %s851 = sphi 0, %s862
                %s852 = sphi %s819, %s865
                %s853 = sphi %s834, %s866
              $region79: #{tpu_custom_call.1} parent=75 // loop_header_branch
                %850 = sbr.rel (%p847) target = $region83
              $region80: #{tpu_custom_call.1} parent=75 // loop_body
                %v854 = vld [vmem:[%s852] sm:$0xff]
                %855 = vst [vmem:[%s853] sm:$0xff] %v854
                %v856 = vld [vmem:[%s852 + $0x8] sm:$0xff]
                %857 = vst [vmem:[%s853 + $0x8] sm:$0xff] %v856
                %v858 = vld [vmem:[%s852 + $0x10] sm:$0xff]
                %859 = vst [vmem:[%s853 + $0x10] sm:$0xff] %v858
                %s860 = sadd.s32 1, %s851
                %p861 = scmp.ge.s32.totalorder %s860, %s843
                %s862 = scalar_select %p861, 0, %s860
                %s863 = smul.u32 %s862, 24
                %s864 = smul.u32 %s862, 24
                %s865 = scalar_lea.vmem %s819, %s863 [#allocation3]
                %s866 = scalar_lea.vmem %s834, %s864
              $region81: #{tpu_custom_call.1} parent=75 // loop_footer
                %s848 = sadd.s32 %s846, 1
              $region82: #{tpu_custom_call.1} parent=75 // loop_footer_branch
                %845 = sbr.rel target = $region78
              $region83: #{tpu_custom_call.1} parent=75 // loop_exit
                _
              %s867 = sdiv.u32.pop %s830, 3
              %s868 = srem.u32.pop %s830, 3
              %s869 = smul.u32 %s867, 3
              %s870 = smul.u32 8, %s869
              %s871 = scalar_lea.vmem %s819, %s870 [#allocation3]
              %s872 = smul.u32 8, %s869
              %s873 = scalar_lea.vmem %s834, %s872
              // While loop
              $region84: #{tpu_custom_call.1} parent=75 // loop_pre_header
                _
              $region85: #{tpu_custom_call.1} parent=75 // loop_header
                %s875 = sphi 0, %s877
                %p876 = scmp.ge.s32.totalorder %s875, %s868
                %s880 = sphi 0, %s887
                %s881 = sphi %s871, %s890
                %s882 = sphi %s873, %s891
              $region86: #{tpu_custom_call.1} parent=75 // loop_header_branch
                %879 = sbr.rel (%p876) target = $region90
              $region87: #{tpu_custom_call.1} parent=75 // loop_body
                %v883 = vld [vmem:[%s881] sm:$0xff]
                %884 = vst [vmem:[%s882] sm:$0xff] %v883
                %s885 = sadd.s32 1, %s880
                %p886 = scmp.ge.s32.totalorder %s885, %s868
                %s887 = scalar_select %p886, 0, %s885
                %s888 = smul.u32 %s887, 8
                %s889 = smul.u32 %s887, 8
                %s890 = scalar_lea.vmem %s871, %s888 [#allocation3]
                %s891 = scalar_lea.vmem %s873, %s889
              $region88: #{tpu_custom_call.1} parent=75 // loop_footer
                %s877 = sadd.s32 %s875, 1
              $region89: #{tpu_custom_call.1} parent=75 // loop_footer_branch
                %874 = sbr.rel target = $region85
              $region90: #{tpu_custom_call.1} parent=75 // loop_exit
                _
            $region76: #{tpu_custom_call.1} parent=67 // pred_fallthru
              _
          $region68: #{tpu_custom_call.1} parent=63 // pred_fallthru
            _
          %945 = vnop
        $region64: #{tpu_custom_call.1} parent=59 // pred_fallthru
          _
        // Predicated region
        $region113: #{tpu_custom_call.1} parent=59 // pred_check
          %p946 = pneg %p288
        $region114: #{tpu_custom_call.1} parent=59 // pred_check_branch
          %948 = sbr.rel (%p946) target = $region116
        $region115: #{tpu_custom_call.1} parent=59 // pred_region
          %s949 = smul.u32 3, %s24
          %s950 = ssub.s32 5, %s949
          %p951 = scmp.lt.s32.totalorder %s950, 3
          %s952 = scalar_select %p951, %s950, 3
          %s953 = smul.u32 128, %s952
          %p954 = scmp.ne.s32.totalorder 0, %s953
          %s955 = smul.addr %s949, 8
          %s956 = scalar_lea.vmem %s11, %s955
          // Predicated region
          $region117: #{tpu_custom_call.1} parent=115 // pred_check
            %p957 = pneg %p954
          $region118: #{tpu_custom_call.1} parent=115 // pred_check_branch
            %959 = sbr.rel (%p957) target = $region120
          $region119: #{tpu_custom_call.1} parent=115 // pred_region
            // Predicated region
            $region121: #{tpu_custom_call.1} parent=119 // pred_check
              _
            $region122: #{tpu_custom_call.1} parent=119 // pred_check_branch
              %961 = sbr.rel (0) target = $region124
            $region123: #{tpu_custom_call.1} parent=119 // pred_region
              // Predicated region
              $region143: #{tpu_custom_call.1} parent=123 // pred_check
                _
              $region144: #{tpu_custom_call.1} parent=123 // pred_check_branch
                %1015 = sbr.rel (0) target = $region146
              $region145: #{tpu_custom_call.1} parent=123 // pred_region
                %s1016 = sdiv.u32.pop %s952, 3
                %s1017 = srem.u32.pop %s952, 3
                // While loop
                $region147: #{tpu_custom_call.1} parent=145 // loop_pre_header
                  _
                $region148: #{tpu_custom_call.1} parent=145 // loop_header
                  %s1019 = sphi 0, %s1021
                  %p1020 = scmp.ge.s32.totalorder %s1019, %s1016
                  %s1024 = sphi 0, %s1035
                  %s1025 = sphi %s823, %s1038
                  %s1026 = sphi %s956, %s1039
                $region149: #{tpu_custom_call.1} parent=145 // loop_header_branch
                  %1023 = sbr.rel (%p1020) target = $region153
                $region150: #{tpu_custom_call.1} parent=145 // loop_body
                  %v1027 = vld [vmem:[%s1025] sm:$0xff]
                  %1028 = vst [vmem:[%s1026] sm:$0xff] %v1027
                  %v1029 = vld [vmem:[%s1025 + $0x8] sm:$0xff]
                  %1030 = vst [vmem:[%s1026 + $0x8] sm:$0xff] %v1029
                  %v1031 = vld [vmem:[%s1025 + $0x10] sm:$0xff]
                  %1032 = vst [vmem:[%s1026 + $0x10] sm:$0xff] %v1031
                  %s1033 = sadd.s32 1, %s1024
                  %p1034 = scmp.ge.s32.totalorder %s1033, %s1016
                  %s1035 = scalar_select %p1034, 0, %s1033
                  %s1036 = smul.u32 %s1035, 24
                  %s1037 = smul.u32 %s1035, 24
                  %s1038 = scalar_lea.vmem %s823, %s1036 [#allocation4]
                  %s1039 = scalar_lea.vmem %s956, %s1037
                $region151: #{tpu_custom_call.1} parent=145 // loop_footer
                  %s1021 = sadd.s32 %s1019, 1
                $region152: #{tpu_custom_call.1} parent=145 // loop_footer_branch
                  %1018 = sbr.rel target = $region148
                $region153: #{tpu_custom_call.1} parent=145 // loop_exit
                  _
                %s1040 = sdiv.u32.pop %s952, 3
                %s1041 = srem.u32.pop %s952, 3
                %s1042 = smul.u32 %s1040, 3
                %s1043 = smul.u32 8, %s1042
                %s1044 = scalar_lea.vmem %s823, %s1043 [#allocation4]
                %s1045 = smul.u32 8, %s1042
                %s1046 = scalar_lea.vmem %s956, %s1045
                // While loop
                $region154: #{tpu_custom_call.1} parent=145 // loop_pre_header
                  _
                $region155: #{tpu_custom_call.1} parent=145 // loop_header
                  %s1048 = sphi 0, %s1050
                  %p1049 = scmp.ge.s32.totalorder %s1048, %s1041
                  %s1053 = sphi 0, %s1060
                  %s1054 = sphi %s1044, %s1063
                  %s1055 = sphi %s1046, %s1064
                $region156: #{tpu_custom_call.1} parent=145 // loop_header_branch
                  %1052 = sbr.rel (%p1049) target = $region160
                $region157: #{tpu_custom_call.1} parent=145 // loop_body
                  %v1056 = vld [vmem:[%s1054] sm:$0xff]
                  %1057 = vst [vmem:[%s1055] sm:$0xff] %v1056
                  %s1058 = sadd.s32 1, %s1053
                  %p1059 = scmp.ge.s32.totalorder %s1058, %s1041
                  %s1060 = scalar_select %p1059, 0, %s1058
                  %s1061 = smul.u32 %s1060, 8
                  %s1062 = smul.u32 %s1060, 8
                  %s1063 = scalar_lea.vmem %s1044, %s1061 [#allocation4]
                  %s1064 = scalar_lea.vmem %s1046, %s1062
                $region158: #{tpu_custom_call.1} parent=145 // loop_footer
                  %s1050 = sadd.s32 %s1048, 1
                $region159: #{tpu_custom_call.1} parent=145 // loop_footer_branch
                  %1047 = sbr.rel target = $region155
                $region160: #{tpu_custom_call.1} parent=145 // loop_exit
                  _
              $region146: #{tpu_custom_call.1} parent=123 // pred_fallthru
                _
              // Predicated region
              $region161: #{tpu_custom_call.1} parent=123 // pred_check
                _
              $region162: #{tpu_custom_call.1} parent=123 // pred_check_branch
                %1066 = sbr.rel target = $region164
              $region163: #{tpu_custom_call.1} parent=123 // pred_region
                _
              $region164: #{tpu_custom_call.1} parent=123 // pred_fallthru
                _
            $region124: #{tpu_custom_call.1} parent=119 // pred_fallthru
              _
            // Predicated region
            $region125: #{tpu_custom_call.1} parent=119 // pred_check
              _
            $region126: #{tpu_custom_call.1} parent=119 // pred_check_branch
              %963 = sbr.rel target = $region128
            $region127: #{tpu_custom_call.1} parent=119 // pred_region
              %s965 = sdiv.u32.pop %s952, 3
              %s966 = srem.u32.pop %s952, 3
              // While loop
              $region129: #{tpu_custom_call.1} parent=127 // loop_pre_header
                _
              $region130: #{tpu_custom_call.1} parent=127 // loop_header
                %s968 = sphi 0, %s970
                %p969 = scmp.ge.s32.totalorder %s968, %s965
                %s973 = sphi 0, %s984
                %s974 = sphi %s823, %s987
                %s975 = sphi %s956, %s988
              $region131: #{tpu_custom_call.1} parent=127 // loop_header_branch
                %972 = sbr.rel (%p969) target = $region135
              $region132: #{tpu_custom_call.1} parent=127 // loop_body
                %v976 = vld [vmem:[%s974] sm:$0xff]
                %977 = vst [vmem:[%s975] sm:$0xff] %v976
                %v978 = vld [vmem:[%s974 + $0x8] sm:$0xff]
                %979 = vst [vmem:[%s975 + $0x8] sm:$0xff] %v978
                %v980 = vld [vmem:[%s974 + $0x10] sm:$0xff]
                %981 = vst [vmem:[%s975 + $0x10] sm:$0xff] %v980
                %s982 = sadd.s32 1, %s973
                %p983 = scmp.ge.s32.totalorder %s982, %s965
                %s984 = scalar_select %p983, 0, %s982
                %s985 = smul.u32 %s984, 24
                %s986 = smul.u32 %s984, 24
                %s987 = scalar_lea.vmem %s823, %s985 [#allocation4]
                %s988 = scalar_lea.vmem %s956, %s986
              $region133: #{tpu_custom_call.1} parent=127 // loop_footer
                %s970 = sadd.s32 %s968, 1
              $region134: #{tpu_custom_call.1} parent=127 // loop_footer_branch
                %967 = sbr.rel target = $region130
              $region135: #{tpu_custom_call.1} parent=127 // loop_exit
                _
              %s989 = sdiv.u32.pop %s952, 3
              %s990 = srem.u32.pop %s952, 3
              %s991 = smul.u32 %s989, 3
              %s992 = smul.u32 8, %s991
              %s993 = scalar_lea.vmem %s823, %s992 [#allocation4]
              %s994 = smul.u32 8, %s991
              %s995 = scalar_lea.vmem %s956, %s994
              // While loop
              $region136: #{tpu_custom_call.1} parent=127 // loop_pre_header
                _
              $region137: #{tpu_custom_call.1} parent=127 // loop_header
                %s997 = sphi 0, %s999
                %p998 = scmp.ge.s32.totalorder %s997, %s990
                %s1002 = sphi 0, %s1009
                %s1003 = sphi %s993, %s1012
                %s1004 = sphi %s995, %s1013
              $region138: #{tpu_custom_call.1} parent=127 // loop_header_branch
                %1001 = sbr.rel (%p998) target = $region142
              $region139: #{tpu_custom_call.1} parent=127 // loop_body
                %v1005 = vld [vmem:[%s1003] sm:$0xff]
                %1006 = vst [vmem:[%s1004] sm:$0xff] %v1005
                %s1007 = sadd.s32 1, %s1002
                %p1008 = scmp.ge.s32.totalorder %s1007, %s990
                %s1009 = scalar_select %p1008, 0, %s1007
                %s1010 = smul.u32 %s1009, 8
                %s1011 = smul.u32 %s1009, 8
                %s1012 = scalar_lea.vmem %s993, %s1010 [#allocation4]
                %s1013 = scalar_lea.vmem %s995, %s1011
              $region140: #{tpu_custom_call.1} parent=127 // loop_footer
                %s999 = sadd.s32 %s997, 1
              $region141: #{tpu_custom_call.1} parent=127 // loop_footer_branch
                %996 = sbr.rel target = $region137
              $region142: #{tpu_custom_call.1} parent=127 // loop_exit
                _
            $region128: #{tpu_custom_call.1} parent=119 // pred_fallthru
              _
          $region120: #{tpu_custom_call.1} parent=115 // pred_fallthru
            _
          %1067 = vnop
        $region116: #{tpu_custom_call.1} parent=59 // pred_fallthru
          _
      $region60: #{tpu_custom_call.1} parent=5 // pred_fallthru
        _
      %p1068 = scmp.le.s32.totalorder 2, %s19
      // Predicated region
      $region165: #{tpu_custom_call.1} parent=5 // pred_check
        %p1069 = pneg %p1068
      $region166: #{tpu_custom_call.1} parent=5 // pred_check_branch
        %1071 = sbr.rel (%p1069) target = $region168
      $region167: #{tpu_custom_call.1} parent=5 // pred_region
        %s1072 = ssub.s32 %s19, 2
        // Predicated region
        $region169: #{tpu_custom_call.1} parent=167 // pred_check
          %p1073 = pneg %p268
        $region170: #{tpu_custom_call.1} parent=167 // pred_check_branch
          %1075 = sbr.rel (%p1073) target = $region172
        $region171: #{tpu_custom_call.1} parent=167 // pred_region
          %s1076 = sand.u32 %s253, 1
          %s1077 = sand.u32 %s253, 1
          %s1078 = smul.addr %s1077, 24
          %s1079 = scalar_lea.vmem [#allocation3], %s1078
        $region172: #{tpu_custom_call.1} parent=167 // pred_fallthru
          _
        // Predicated region
        $region173: #{tpu_custom_call.1} parent=167 // pred_check
          %p1080 = pneg %p294
        $region174: #{tpu_custom_call.1} parent=167 // pred_check_branch
          %1082 = sbr.rel (%p1080) target = $region176
        $region175: #{tpu_custom_call.1} parent=167 // pred_region
          %s1083 = sand.u32 %s279, 1
          %s1084 = sand.u32 %s279, 1
          %s1085 = smul.addr %s1084, 24
          %s1086 = scalar_lea.vmem [#allocation4], %s1085
        $region176: #{tpu_custom_call.1} parent=167 // pred_fallthru
          _
      $region168: #{tpu_custom_call.1} parent=5 // pred_fallthru
        _
    $region6: #{tpu_custom_call.1} parent=1 // loop_footer
      %s23 = sadd.s32 1, %s19
    $region7: #{tpu_custom_call.1} parent=1 // loop_footer_branch
      %18 = sbr.rel target = $region3
    $region8: #{tpu_custom_call.1} parent=1 // loop_exit
      _

</llo_original>
